<compile_context>
chip_gen: v7x
topology: tpu7x:2x2x1
jax: 0.10.0
libtpu: 0.0.40
codegen_flags: <defaults>
</compile_context>

<pallas_src>
import functools

import jax
import jax.numpy as jnp
from jax.experimental import pallas as pl
from jax.experimental.pallas import tpu as pltpu


def _round_up(n: int, m: int) -> int:
    return ((n + m - 1) // m) * m


def _is_v5e() -> bool:
    """Best-effort chip-generation probe (gates the fused layer-1 layout)."""
    try:
        kind = jax.devices()[0].device_kind.lower()
    except Exception:
        return False
    return ("v5e" in kind) or ("v5 lite" in kind) or ("v5lite" in kind)


# ---------------------------------------------------------------------------
# Kernel: one batch tile.
# ---------------------------------------------------------------------------
def decoder_y_kernel(x_ref, u_ref, t_ref,
                     w0x_ref, w0u_ref, b0_ref,
                     w1_ref, b1_ref, w2_ref, b2_ref,
                     out_ref, *, H0: int, H1: int, fuse_l1: bool):
    """y = where(t==1, net1([x,u]), net0([x,u])) for one [TB, .] batch tile."""
    x = x_ref[...].astype(jnp.bfloat16)                      # [TB, d_x]
    u = u_ref[...].astype(jnp.bfloat16)                      # [TB, d_u]

    # ---- layer 0 (both heads, column-fused): [TB, 2*H0] --------------------
    z = (jnp.dot(x, w0x_ref[...], preferred_element_type=jnp.float32)
         + jnp.dot(u, w0u_ref[...], preferred_element_type=jnp.float32)
         + b0_ref[...])
    z = jnp.maximum(z, 0.0).astype(jnp.bfloat16)             # ReLU

    # ---- layer 1 ------------------------------------------------------------
    if fuse_l1:
        # Single 2*H0-wide block-diagonal matmul: one full-width MXU pass on
        # the 256x256 MXUs of v6e / v7x.
        z1 = (jnp.dot(z, w1_ref[...], preferred_element_type=jnp.float32)
              + b1_ref[...])
        z1 = jnp.maximum(z1, 0.0).astype(jnp.bfloat16)       # [TB, 2*H1]
        h0 = z1[:, :H1]
        h1 = z1[:, H1:]
    else:
        # v5e (128x128 MXU tiles): multiply the two diagonal blocks separately
        # so no zero tiles are pushed through the MXU.
        h0 = (jnp.dot(z[:, :H0], w1_ref[:H0, :H1],
                      preferred_element_type=jnp.float32) + b1_ref[:, :H1])
        h1 = (jnp.dot(z[:, H0:], w1_ref[H0:, H1:],
                      preferred_element_type=jnp.float32) + b1_ref[:, H1:])
        h0 = jnp.maximum(h0, 0.0).astype(jnp.bfloat16)       # [TB, H1]
        h1 = jnp.maximum(h1, 0.0).astype(jnp.bfloat16)       # [TB, H1]

    # ---- layer 2 (narrow d_y-wide heads) + treatment select ----------------
    y0 = (jnp.dot(h0, w2_ref[:H1, :], preferred_element_type=jnp.float32)
          + b2_ref[0])                                       # [TB, d_y]
    y1 = (jnp.dot(h1, w2_ref[H1:, :], preferred_element_type=jnp.float32)
          + b2_ref[1])                                       # [TB, d_y]

    t = t_ref[...]                                           # [TB, 1] int32
    out_ref[...] = jnp.where(t == 1, y1, y0)


# ---------------------------------------------------------------------------
# Wrapper: parameter fusion (glue) + batch-tiled pallas_call.
# ---------------------------------------------------------------------------
def decoder_y_forward(x, t, u, params, *, block_b=1024, fuse_l1=None):
    """p(y|x,t,u) mean prediction.

    x: [B, d_x] f32, t: [B] int32 (treatment in {0..k-1}), u: [B, d_u] f32.
    params: dict of (W, b) for the 3 linear layers of net0 and net1
            (W stored [in_features, out_features], b stored [1, out_features]).
    """
    B, d_x = x.shape
    d_u = u.shape[1]
    H0 = params["w00"].shape[1]
    H1 = params["w01"].shape[1]
    d_y = params["w02"].shape[1]

    if fuse_l1 is None:
        fuse_l1 = not _is_v5e()        # fused 256-wide layer 1 on v6e / v7x

    # --- fuse the two heads' parameters (plain-JAX glue, folded by XLA) -----
    w0 = jnp.concatenate([params["w00"], params["w10"]], axis=1)   # [d_in, 2H0]
    w0x, w0u = w0[:d_x], w0[d_x:]              # layer 0 fed from x and u directly
    b0 = jnp.concatenate([params["b00"], params["b10"]], axis=1)   # [1, 2H0]

    w1 = jnp.zeros((2 * H0, 2 * H1), jnp.float32)
    w1 = w1.at[:H0, :H1].set(params["w01"]).at[H0:, H1:].set(params["w11"])
    b1 = jnp.concatenate([params["b01"], params["b11"]], axis=1)   # [1, 2H1]

    w2 = jnp.concatenate([params["w02"], params["w12"]], axis=0)   # [2H1, d_y]
    b2 = jnp.concatenate([params["b02"], params["b12"]], axis=0)   # [2,  d_y]

    # bf16 matmul operands; biases stay f32 (f32 VPU work on all gens).
    w0x, w0u, w1, w2 = (w.astype(jnp.bfloat16) for w in (w0x, w0u, w1, w2))

    # --- batch tiling: TB multiple of 16; >= 2 grid steps once B >= 32 -------
    TB = min(block_b, max(16, _round_up(B // 2, 16)))
    B_pad = _round_up(B, TB)
    if B_pad != B:
        pad = B_pad - B
        x = jnp.pad(x, ((0, pad), (0, 0)))
        u = jnp.pad(u, ((0, pad), (0, 0)))
        t = jnp.pad(t, (0, pad))               # padded rows take the t==0 path
    t_col = t.reshape(-1, 1).astype(jnp.int32)                     # t.view(-1, 1)

    grid = (B_pad // TB,)

    def batch_spec(feat):
        return pl.BlockSpec((TB, feat), lambda i: (i, 0))

    def resident(shape):                       # constant index -> stays in VMEM
        return pl.BlockSpec(shape, lambda i: (0, 0))

    l1_flops = (2 * H0) * (2 * H1) if fuse_l1 else 2 * (H0 * H1)
    flops = 2 * B_pad * ((d_x + d_u) * 2 * H0 + l1_flops + 2 * (H1 * d_y))
    bytes_accessed = (x.size * 4 + u.size * 4 + t_col.size * 4
                      + (w0x.size + w0u.size + w1.size + w2.size) * 2
                      + (b0.size + b1.size + b2.size) * 4
                      + B_pad * d_y * 4)

    kernel = functools.partial(decoder_y_kernel, H0=H0, H1=H1, fuse_l1=fuse_l1)

    out = pl.pallas_call(
        kernel,
        out_shape=jax.ShapeDtypeStruct((B_pad, d_y), jnp.float32),
        grid=grid,
        in_specs=[
            batch_spec(d_x),                   # x tile   (f32, cast in-kernel)
            batch_spec(d_u),                   # u tile   (f32, cast in-kernel)
            batch_spec(1),                     # t tile   (int32)
            resident(w0x.shape), resident(w0u.shape), resident(b0.shape),
            resident(w1.shape), resident(b1.shape),
            resident(w2.shape), resident(b2.shape),
        ],
        out_specs=batch_spec(d_y),             # exact-width f32 output
        compiler_params=pltpu.CompilerParams(
            dimension_semantics=("parallel",)),
        cost_estimate=pl.CostEstimate(
            flops=int(flops), transcendentals=0,
            bytes_accessed=int(bytes_accessed)),
    )(x, u, t_col, w0x, w0u, b0, w1, b1, w2, b2)

    return out[:B] if B_pad != B else out


# ---------------------------------------------------------------------------
# Deterministic synthetic parameters + pure-JAX reference.
# ---------------------------------------------------------------------------
def make_params(key, d_in, hidden_dims, d_y):
    """Synthetic parameters matching make_mlp([d_in, *hidden, d_y]) twice."""
    dims = [d_in, *hidden_dims, d_y]
    params = {}
    for net in range(2):
        for layer in range(len(dims) - 1):
            key, kw, kb = jax.random.split(key, 3)
            fan_in, fan_out = dims[layer], dims[layer + 1]
            scale = 1.0 / jnp.sqrt(fan_in)
            params[f"w{net}{layer}"] = jax.random.uniform(
                kw, (fan_in, fan_out), jnp.float32, -scale, scale)
            params[f"b{net}{layer}"] = jax.random.uniform(
                kb, (1, fan_out), jnp.float32, -scale, scale)
    return params


def reference_forward(x, t, u, params):
    """Pure-JAX f32 reference mirroring the PyTorch module."""
    h = jnp.concatenate([x, u], axis=-1)

    def mlp(net):
        z = jnp.maximum(h @ params[f"w{net}0"] + params[f"b{net}0"], 0.0)
        z = jnp.maximum(z @ params[f"w{net}1"] + params[f"b{net}1"], 0.0)
        return z @ params[f"w{net}2"] + params[f"b{net}2"]

    y0, y1 = mlp(0), mlp(1)
    return jnp.where(t.reshape(-1, 1) == 1, y1, y0)


if __name__ == "__main__":
    # Small shapes consistent with the module: d_x=16, d_u=8, k=2, d_y=4,
    # hidden_dims=(128, 128) (module default), batch=8.
    B, d_x, d_u, d_y, k = 8, 16, 8, 4, 2
    hidden_dims = (128, 128)

    key = jax.random.PRNGKey(0)
    kx, ku, kt, kp = jax.random.split(key, 4)

    x = jax.random.normal(kx, (B, d_x), jnp.float32)
    u = jax.random.normal(ku, (B, d_u), jnp.float32)
    t = jax.random.randint(kt, (B,), 0, k, jnp.int32)
    params = make_params(kp, d_x + d_u, hidden_dims, d_y)

    y = jax.jit(decoder_y_forward)(x, t, u, params)
    y = jax.block_until_ready(y)

    y_ref = reference_forward(x, t, u, params)
    assert y.shape == (B, d_y)
    # bf16 matmul operands (f32 accumulation) vs f32 reference -> looser tol.
    assert jnp.allclose(y, y_ref, atol=5e-2, rtol=5e-2), \
        f"max abs err {jnp.max(jnp.abs(y - y_ref))}"

    print("KERNEL_OK")
</pallas_src>

<mosaic_0001>
module attributes {stable_mosaic.version = 11 : i64} {
  func.func @decoder_y_kernel(%arg0: i32, %arg1: memref<16x16xf32, #tpu.memory_space<vmem>>, %arg2: memref<16x8xf32, #tpu.memory_space<vmem>>, %arg3: memref<16x1xi32, #tpu.memory_space<vmem>>, %arg4: memref<16x256xbf16, #tpu.memory_space<vmem>>, %arg5: memref<8x256xbf16, #tpu.memory_space<vmem>>, %arg6: memref<1x256xf32, #tpu.memory_space<vmem>>, %arg7: memref<256x256xbf16, #tpu.memory_space<vmem>>, %arg8: memref<1x256xf32, #tpu.memory_space<vmem>>, %arg9: memref<256x4xbf16, #tpu.memory_space<vmem>>, %arg10: memref<2x4xf32, #tpu.memory_space<vmem>>, %arg11: memref<16x4xf32, #tpu.memory_space<vmem>>) attributes {dimension_semantics = [#tpu.dimension_semantics<parallel>], iteration_bounds = array<i64: 1>, scalar_prefetch = 0 : i64, scratch_operands = 0 : i64, tpu.core_type = #tpu.core_type<tc>, window_params = [{transform_indices = @transform_0, window_bounds = array<i64: 16, 16>}, {transform_indices = @transform_1, window_bounds = array<i64: 16, 8>}, {transform_indices = @transform_2, window_bounds = array<i64: 16, 1>}, {pipeline_mode = #tpu.pipeline_mode<synchronous>, transform_indices = @transform_3, window_bounds = array<i64: 16, 256>}, {pipeline_mode = #tpu.pipeline_mode<synchronous>, transform_indices = @transform_4, window_bounds = array<i64: 8, 256>}, {pipeline_mode = #tpu.pipeline_mode<synchronous>, transform_indices = @transform_5, window_bounds = array<i64: 1, 256>}, {pipeline_mode = #tpu.pipeline_mode<synchronous>, transform_indices = @transform_6, window_bounds = array<i64: 256, 256>}, {pipeline_mode = #tpu.pipeline_mode<synchronous>, transform_indices = @transform_7, window_bounds = array<i64: 1, 256>}, {pipeline_mode = #tpu.pipeline_mode<synchronous>, transform_indices = @transform_8, window_bounds = array<i64: 256, 4>}, {pipeline_mode = #tpu.pipeline_mode<synchronous>, transform_indices = @transform_9, window_bounds = array<i64: 2, 4>}, {transform_indices = @transform_10, window_bounds = array<i64: 16, 4>}]} {
    %c0 = arith.constant 0 : index
    %c0_0 = arith.constant 0 : index
    %0 = vector.load %arg1[%c0, %c0_0] : memref<16x16xf32, #tpu.memory_space<vmem>>, vector<16x16xf32>
    %1 = arith.truncf %0 : vector<16x16xf32> to vector<16x16xbf16>
    %c0_1 = arith.constant 0 : index
    %c0_2 = arith.constant 0 : index
    %2 = vector.load %arg2[%c0_1, %c0_2] : memref<16x8xf32, #tpu.memory_space<vmem>>, vector<16x8xf32>
    %3 = arith.truncf %2 : vector<16x8xf32> to vector<16x8xbf16>
    %c0_3 = arith.constant 0 : index
    %c0_4 = arith.constant 0 : index
    %4 = vector.load %arg4[%c0_3, %c0_4] : memref<16x256xbf16, #tpu.memory_space<vmem>>, vector<16x256xbf16>
    %cst = arith.constant dense<0.000000e+00> : vector<16x256xf32>
    %5 = tpu.matmul %1, %4, %cst {dimension_numbers = #tpu.dot_dimension_numbers<[1], [0], [0], [1], [0, 0, 1, 1], [], []>} : vector<16x16xbf16>, vector<16x256xbf16>, vector<16x256xf32> -> vector<16x256xf32>
    %c0_5 = arith.constant 0 : index
    %c0_6 = arith.constant 0 : index
    %6 = vector.load %arg5[%c0_5, %c0_6] : memref<8x256xbf16, #tpu.memory_space<vmem>>, vector<8x256xbf16>
    %cst_7 = arith.constant dense<0.000000e+00> : vector<16x256xf32>
    %7 = tpu.matmul %3, %6, %cst_7 {dimension_numbers = #tpu.dot_dimension_numbers<[1], [0], [0], [1], [0, 0, 1, 1], [], []>} : vector<16x8xbf16>, vector<8x256xbf16>, vector<16x256xf32> -> vector<16x256xf32>
    %8 = arith.addf %5, %7 : vector<16x256xf32>
    %c0_8 = arith.constant 0 : index
    %c0_9 = arith.constant 0 : index
    %9 = vector.load %arg6[%c0_8, %c0_9] : memref<1x256xf32, #tpu.memory_space<vmem>>, vector<1x256xf32>
    %10 = vector.broadcast %9 : vector<1x256xf32> to vector<16x256xf32>
    %11 = arith.addf %8, %10 : vector<16x256xf32>
    %cst_10 = arith.constant 0.000000e+00 : f32
    %12 = vector.broadcast %cst_10 : f32 to vector<16x256xf32>
    %13 = arith.maximumf %11, %12 : vector<16x256xf32>
    %14 = arith.truncf %13 : vector<16x256xf32> to vector<16x256xbf16>
    %c0_11 = arith.constant 0 : index
    %c0_12 = arith.constant 0 : index
    %15 = vector.load %arg7[%c0_11, %c0_12] : memref<256x256xbf16, #tpu.memory_space<vmem>>, vector<256x256xbf16>
    %cst_13 = arith.constant dense<0.000000e+00> : vector<16x256xf32>
    %16 = tpu.matmul %14, %15, %cst_13 {dimension_numbers = #tpu.dot_dimension_numbers<[1], [0], [0], [1], [0, 0, 1, 1], [], []>} : vector<16x256xbf16>, vector<256x256xbf16>, vector<16x256xf32> -> vector<16x256xf32>
    %c0_14 = arith.constant 0 : index
    %c0_15 = arith.constant 0 : index
    %17 = vector.load %arg8[%c0_14, %c0_15] : memref<1x256xf32, #tpu.memory_space<vmem>>, vector<1x256xf32>
    %18 = vector.broadcast %17 : vector<1x256xf32> to vector<16x256xf32>
    %19 = arith.addf %16, %18 : vector<16x256xf32>
    %cst_16 = arith.constant 0.000000e+00 : f32
    %20 = vector.broadcast %cst_16 : f32 to vector<16x256xf32>
    %21 = arith.maximumf %19, %20 : vector<16x256xf32>
    %22 = arith.truncf %21 : vector<16x256xf32> to vector<16x256xbf16>
    %23 = vector.extract_strided_slice %22 {offsets = [0, 0], sizes = [16, 128], strides = [1, 1]} : vector<16x256xbf16> to vector<16x128xbf16>
    %24 = vector.extract_strided_slice %22 {offsets = [0, 128], sizes = [16, 128], strides = [1, 1]} : vector<16x256xbf16> to vector<16x128xbf16>
    %c0_17 = arith.constant 0 : index
    %c0_18 = arith.constant 0 : index
    %25 = vector.load %arg9[%c0_17, %c0_18] : memref<256x4xbf16, #tpu.memory_space<vmem>>, vector<128x4xbf16>
    %cst_19 = arith.constant dense<0.000000e+00> : vector<16x4xf32>
    %26 = tpu.matmul %23, %25, %cst_19 {dimension_numbers = #tpu.dot_dimension_numbers<[1], [0], [0], [1], [0, 0, 1, 1], [], []>} : vector<16x128xbf16>, vector<128x4xbf16>, vector<16x4xf32> -> vector<16x4xf32>
    %c0_20 = arith.constant 0 : index
    %c0_21 = arith.constant 0 : index
    %27 = vector.load %arg10[%c0_20, %c0_21] : memref<2x4xf32, #tpu.memory_space<vmem>>, vector<1x4xf32>
    %28 = vector.shape_cast %27 : vector<1x4xf32> to vector<4xf32>
    %29 = vector.shape_cast %28 : vector<4xf32> to vector<1x4xf32>
    %30 = vector.broadcast %29 : vector<1x4xf32> to vector<16x4xf32>
    %31 = arith.addf %26, %30 : vector<16x4xf32>
    %c128 = arith.constant 128 : index
    %c0_22 = arith.constant 0 : index
    %32 = vector.load %arg9[%c128, %c0_22] : memref<256x4xbf16, #tpu.memory_space<vmem>>, vector<128x4xbf16>
    %cst_23 = arith.constant dense<0.000000e+00> : vector<16x4xf32>
    %33 = tpu.matmul %24, %32, %cst_23 {dimension_numbers = #tpu.dot_dimension_numbers<[1], [0], [0], [1], [0, 0, 1, 1], [], []>} : vector<16x128xbf16>, vector<128x4xbf16>, vector<16x4xf32> -> vector<16x4xf32>
    %c1 = arith.constant 1 : index
    %c0_24 = arith.constant 0 : index
    %34 = vector.load %arg10[%c1, %c0_24] : memref<2x4xf32, #tpu.memory_space<vmem>>, vector<1x4xf32>
    %35 = vector.shape_cast %34 : vector<1x4xf32> to vector<4xf32>
    %36 = vector.shape_cast %35 : vector<4xf32> to vector<1x4xf32>
    %37 = vector.broadcast %36 : vector<1x4xf32> to vector<16x4xf32>
    %38 = arith.addf %33, %37 : vector<16x4xf32>
    %c0_25 = arith.constant 0 : index
    %c0_26 = arith.constant 0 : index
    %39 = vector.load %arg3[%c0_25, %c0_26] : memref<16x1xi32, #tpu.memory_space<vmem>>, vector<16x1xi32>
    %c1_i32 = arith.constant 1 : i32
    %40 = vector.broadcast %c1_i32 : i32 to vector<16x1xi32>
    %41 = arith.cmpi eq, %39, %40 : vector<16x1xi32>
    %42 = vector.shape_cast %41 : vector<16x1xi1> to vector<16x1xi1>
    %43 = vector.broadcast %42 : vector<16x1xi1> to vector<16x4xi1>
    %44 = arith.select %43, %38, %31 : vector<16x4xi1>, vector<16x4xf32>
    %c0_27 = arith.constant 0 : index
    %c0_28 = arith.constant 0 : index
    %45 = vector.load %arg11[%c0_27, %c0_28] : memref<16x4xf32, #tpu.memory_space<vmem>>, vector<16x4xf32>
    tpu.vector_store %arg11[%c0_27, %c0_28], %44 {strides = array<i32>} : memref<16x4xf32, #tpu.memory_space<vmem>>, vector<16x4xf32>,
    return
  }
  func.func @transform_0(%arg0: i32) -> (i32, i32) {
    %c0_i32 = arith.constant 0 : i32
    %c0_i32_0 = arith.constant 0 : i32
    return %arg0, %c0_i32 : i32, i32
  }
  func.func @transform_1(%arg0: i32) -> (i32, i32) {
    %c0_i32 = arith.constant 0 : i32
    %c0_i32_0 = arith.constant 0 : i32
    return %arg0, %c0_i32 : i32, i32
  }
  func.func @transform_2(%arg0: i32) -> (i32, i32) {
    %c0_i32 = arith.constant 0 : i32
    %c0_i32_0 = arith.constant 0 : i32
    return %arg0, %c0_i32 : i32, i32
  }
  func.func @transform_3(%arg0: i32) -> (i32, i32) {
    %c0_i32 = arith.constant 0 : i32
    %c0_i32_0 = arith.constant 0 : i32
    %c0_i32_1 = arith.constant 0 : i32
    return %c0_i32, %c0_i32_0 : i32, i32
  }
  func.func @transform_4(%arg0: i32) -> (i32, i32) {
    %c0_i32 = arith.constant 0 : i32
    %c0_i32_0 = arith.constant 0 : i32
    %c0_i32_1 = arith.constant 0 : i32
    return %c0_i32, %c0_i32_0 : i32, i32
  }
  func.func @transform_5(%arg0: i32) -> (i32, i32) {
    %c0_i32 = arith.constant 0 : i32
    %c0_i32_0 = arith.constant 0 : i32
    %c0_i32_1 = arith.constant 0 : i32
    return %c0_i32, %c0_i32_0 : i32, i32
  }
  func.func @transform_6(%arg0: i32) -> (i32, i32) {
    %c0_i32 = arith.constant 0 : i32
    %c0_i32_0 = arith.constant 0 : i32
    %c0_i32_1 = arith.constant 0 : i32
    return %c0_i32, %c0_i32_0 : i32, i32
  }
  func.func @transform_7(%arg0: i32) -> (i32, i32) {
    %c0_i32 = arith.constant 0 : i32
    %c0_i32_0 = arith.constant 0 : i32
    %c0_i32_1 = arith.constant 0 : i32
    return %c0_i32, %c0_i32_0 : i32, i32
  }
  func.func @transform_8(%arg0: i32) -> (i32, i32) {
    %c0_i32 = arith.constant 0 : i32
    %c0_i32_0 = arith.constant 0 : i32
    %c0_i32_1 = arith.constant 0 : i32
    return %c0_i32, %c0_i32_0 : i32, i32
  }
  func.func @transform_9(%arg0: i32) -> (i32, i32) {
    %c0_i32 = arith.constant 0 : i32
    %c0_i32_0 = arith.constant 0 : i32
    %c0_i32_1 = arith.constant 0 : i32
    return %c0_i32, %c0_i32_0 : i32, i32
  }
  func.func @transform_10(%arg0: i32) -> (i32, i32) {
    %c0_i32 = arith.constant 0 : i32
    %c0_i32_0 = arith.constant 0 : i32
    return %arg0, %c0_i32 : i32, i32
  }
}

</mosaic_0001>

<llo_original>
// kernel: decoder_y_forward.1
$region0: #{decoder_y_forward.1}
  #allocation0 [shape = 'u32[]', space=smem, size = 0x4, offset = 0x4, fixed_abs, tag = 'smem constant byte address 0x4 - core index']
  #allocation1 [shape = 'u32[144,128]{1,0:T(1,128)}', space=vmem, size = 0x12000, scoped, tag = 'internal scratch']
  %s0 = inlined_call_operand.vmem [shape: f32[16,16], index: 0, kind: input, shape index: {}]
  %s1 = inlined_call_operand.vmem [shape: f32[16,8], index: 1, kind: input, shape index: {}]
  %s2 = inlined_call_operand.vmem [shape: s32[16,1], index: 2, kind: input, shape index: {}]
  %s3 = inlined_call_operand.vmem [shape: bf16[16,256], index: 3, kind: input, shape index: {}]
  %s4 = inlined_call_operand.vmem [shape: bf16[8,256], index: 4, kind: input, shape index: {}]
  %s5 = inlined_call_operand.vmem [shape: f32[1,256], index: 5, kind: input, shape index: {}]
  %s6 = inlined_call_operand.vmem [shape: bf16[256,256], index: 6, kind: input, shape index: {}]
  %s7 = inlined_call_operand.vmem [shape: f32[1,256], index: 7, kind: input, shape index: {}]
  %s8 = inlined_call_operand.vmem [shape: bf16[256,4], index: 8, kind: input, shape index: {}]
  %s9 = inlined_call_operand.vmem [shape: f32[2,4], index: 9, kind: input, shape index: {}]
  %s10 = inlined_call_operand.vmem [shape: f32[16,4], index: 10, kind: output, shape index: {}]
  %s11 = sld [smem:[#allocation0]]
  $region50: #{decoder_y_forward.1} parent=0
    _
  %s13 = ssub.s32 1, %s11
  %s14 = scalar_select 0, %s13, %s11
  // Predicated region
  $region2: #{decoder_y_forward.1} parent=0 // pred_check
    _
  $region3: #{decoder_y_forward.1} parent=0 // pred_check_branch
    %16 = sbr.rel (0) target = $region5
  $region4: #{decoder_y_forward.1} parent=0 // pred_region
    _
  $region5: #{decoder_y_forward.1} parent=0 // pred_fallthru
    _
  // Predicated region
  $region6: #{decoder_y_forward.1} parent=0 // pred_check
    _
  $region7: #{decoder_y_forward.1} parent=0 // pred_check_branch
    %18 = sbr.rel (0) target = $region9
  $region8: #{decoder_y_forward.1} parent=0 // pred_region
    _
  $region9: #{decoder_y_forward.1} parent=0 // pred_fallthru
    _
  // Predicated region
  $region10: #{decoder_y_forward.1} parent=0 // pred_check
    _
  $region11: #{decoder_y_forward.1} parent=0 // pred_check_branch
    %20 = sbr.rel (0) target = $region13
  $region12: #{decoder_y_forward.1} parent=0 // pred_region
    _
  $region13: #{decoder_y_forward.1} parent=0 // pred_fallthru
    _
  // Predicated region
  $region14: #{decoder_y_forward.1} parent=0 // pred_check
    _
  $region15: #{decoder_y_forward.1} parent=0 // pred_check_branch
    %22 = sbr.rel (0) target = $region17
  $region16: #{decoder_y_forward.1} parent=0 // pred_region
    _
  $region17: #{decoder_y_forward.1} parent=0 // pred_fallthru
    _
  // Predicated region
  $region18: #{decoder_y_forward.1} parent=0 // pred_check
    _
  $region19: #{decoder_y_forward.1} parent=0 // pred_check_branch
    %24 = sbr.rel (0) target = $region21
  $region20: #{decoder_y_forward.1} parent=0 // pred_region
    _
  $region21: #{decoder_y_forward.1} parent=0 // pred_fallthru
    _
  // Predicated region
  $region22: #{decoder_y_forward.1} parent=0 // pred_check
    _
  $region23: #{decoder_y_forward.1} parent=0 // pred_check_branch
    %26 = sbr.rel (0) target = $region25
  $region24: #{decoder_y_forward.1} parent=0 // pred_region
    _
  $region25: #{decoder_y_forward.1} parent=0 // pred_fallthru
    _
  // Predicated region
  $region26: #{decoder_y_forward.1} parent=0 // pred_check
    _
  $region27: #{decoder_y_forward.1} parent=0 // pred_check_branch
    %28 = sbr.rel (0) target = $region29
  $region28: #{decoder_y_forward.1} parent=0 // pred_region
    _
  $region29: #{decoder_y_forward.1} parent=0 // pred_fallthru
    _
  // Predicated region
  $region30: #{decoder_y_forward.1} parent=0 // pred_check
    _
  $region31: #{decoder_y_forward.1} parent=0 // pred_check_branch
    %30 = sbr.rel (0) target = $region33
  $region32: #{decoder_y_forward.1} parent=0 // pred_region
    _
  $region33: #{decoder_y_forward.1} parent=0 // pred_fallthru
    _
  // Predicated region
  $region34: #{decoder_y_forward.1} parent=0 // pred_check
    _
  $region35: #{decoder_y_forward.1} parent=0 // pred_check_branch
    %32 = sbr.rel (0) target = $region37
  $region36: #{decoder_y_forward.1} parent=0 // pred_region
    _
  $region37: #{decoder_y_forward.1} parent=0 // pred_fallthru
    _
  // Predicated region
  $region38: #{decoder_y_forward.1} parent=0 // pred_check
    _
  $region39: #{decoder_y_forward.1} parent=0 // pred_check_branch
    %34 = sbr.rel (0) target = $region41
  $region40: #{decoder_y_forward.1} parent=0 // pred_region
    _
  $region41: #{decoder_y_forward.1} parent=0 // pred_fallthru
    _
  %v36 = vld [vmem:[%s0] sm:$0xff]
  %v37 = vld [vmem:[%s0 + $0x8] sm:$0xff]
  %v38 = vpack.c.bf16 %v37, %v36
  %v39 = vld [vmem:[%s1] sm:$0xff]
  %v40 = vld [vmem:[%s1 + $0x8] sm:$0xff]
  %v41 = vpack.c.bf16 %v40, %v39
  %v42 = vld [vmem:[%s3] sm:$0xff]
  %v43 = vld [vmem:[%s3 + $0x8] sm:$0xff]
  %v44 = vld [vmem:[%s4] sm:$0xff]
  %v46 = vunpack.c.l.b16 %v44
  %v47 = vunpack.c.h.b16 %v44
  %v48 = vpack.c.b16 %v46, %v46
  %v49 = vpack.c.b16 %v47, %v47
  %vm50 = vcmask 64512
  %v52 = vsel %vm50, %v41, 0
  %vm54 = vcmask 1043456
  %v56 = vsel %vm54, %v48, 0
  %v59 = vsel %vm54, %v49, 0
  %61 = vmatprep.subr.bf16.mxu0 %v59
  %62 = vmatpush1.bf16.msra.mxu0 %v56
  %63 = vmatprep.subr.bf16.mxu0 0
  %64 = vmatpush1.bf16.msra.mxu0 0
  %65 = vmatprep.subr.bf16.mxu0 0
  %66 = vmatpush1.bf16.msra.mxu0 0
  %67 = vmatprep.subr.bf16.mxu0 0
  %68 = vmatpush1.bf16.msra.mxu0 0
  %69 = vmatprep.subr.bf16.mxu0 0
  %70 = vmatpush1.bf16.msra.mxu0 0
  %71 = vmatprep.subr.bf16.mxu0 0
  %72 = vmatpush1.bf16.msra.mxu0 0
  %73 = vmatprep.subr.bf16.mxu0 0
  %74 = vmatpush1.bf16.msra.mxu0 0
  %75 = vmatprep.subr.bf16.mxu0 0
  %76 = vmatpush1.bf16.msra.mxu0 0
  %77 = vmatprep.subr.bf16.mxu0 0
  %78 = vmatpush1.bf16.msra.mxu0 0
  %79 = vmatprep.subr.bf16.mxu0 0
  %80 = vmatpush1.bf16.msra.mxu0 0
  %81 = vmatprep.subr.bf16.mxu0 0
  %82 = vmatpush1.bf16.msra.mxu0 0
  %83 = vmatprep.subr.bf16.mxu0 0
  %84 = vmatpush1.bf16.msra.mxu0 0
  %85 = vmatprep.subr.bf16.mxu0 0
  %86 = vmatpush1.bf16.msra.mxu0 0
  %87 = vmatprep.subr.bf16.mxu0 0
  %88 = vmatpush1.bf16.msra.mxu0 0
  %89 = vmatprep.subr.bf16.mxu0 0
  %90 = vmatpush1.bf16.msra.mxu0 0
  %91 = vmatprep.subr.bf16.mxu0 0
  %92 = vmatpush1.bf16.msra.mxu0 0
  %93 = vmatprep.mubr.bf16.mxu0 0
  %94 = vmatmul.mubr.bf16.gmra.mrb[0].mxu0 %v52
  %v95 = vpop.f32.mrb[0].mxu0
  %v96 = vadd.f32 0.0, %v95
  %v97 = vpop.f32.mrb[0].mxu0
  %v98 = vadd.f32 0.0, %v97
  %v99 = vpop.f32.mrb[0].mxu0
  %v100 = vadd.f32 0.0, %v99
  %v101 = vpop.f32.mrb[0].mxu0
  %v102 = vadd.f32 0.0, %v101
  %103 = vdwg.mxu0
  %v106 = vunpack.c.l.b16 %v42
  %v107 = vunpack.c.h.b16 %v42
  %v108 = vunpack.c.l.b16 %v43
  %v109 = vunpack.c.h.b16 %v43
  %v110 = vpack.c.b16 %v108, %v106
  %v111 = vpack.c.b16 %v109, %v107
  %vm114 = vcmask 130048
  %v116 = vsel %vm114, %v38, 0
  %118 = vmatprep.subr.bf16.mxu0 %v111
  %119 = vmatpush1.bf16.msra.mxu0 %v110
  %120 = vmatprep.subr.bf16.mxu0 0
  %121 = vmatpush1.bf16.msra.mxu0 0
  %122 = vmatprep.subr.bf16.mxu0 0
  %123 = vmatpush1.bf16.msra.mxu0 0
  %124 = vmatprep.subr.bf16.mxu0 0
  %125 = vmatpush1.bf16.msra.mxu0 0
  %126 = vmatprep.subr.bf16.mxu0 0
  %127 = vmatpush1.bf16.msra.mxu0 0
  %128 = vmatprep.subr.bf16.mxu0 0
  %129 = vmatpush1.bf16.msra.mxu0 0
  %130 = vmatprep.subr.bf16.mxu0 0
  %131 = vmatpush1.bf16.msra.mxu0 0
  %132 = vmatprep.subr.bf16.mxu0 0
  %133 = vmatpush1.bf16.msra.mxu0 0
  %134 = vmatprep.subr.bf16.mxu0 0
  %135 = vmatpush1.bf16.msra.mxu0 0
  %136 = vmatprep.subr.bf16.mxu0 0
  %137 = vmatpush1.bf16.msra.mxu0 0
  %138 = vmatprep.subr.bf16.mxu0 0
  %139 = vmatpush1.bf16.msra.mxu0 0
  %140 = vmatprep.subr.bf16.mxu0 0
  %141 = vmatpush1.bf16.msra.mxu0 0
  %142 = vmatprep.subr.bf16.mxu0 0
  %143 = vmatpush1.bf16.msra.mxu0 0
  %144 = vmatprep.subr.bf16.mxu0 0
  %145 = vmatpush1.bf16.msra.mxu0 0
  %146 = vmatprep.subr.bf16.mxu0 0
  %147 = vmatpush1.bf16.msra.mxu0 0
  %148 = vmatprep.subr.bf16.mxu0 0
  %149 = vmatpush1.bf16.msra.mxu0 0
  %150 = vmatprep.mubr.bf16.mxu0 0
  %151 = vmatmul.mubr.bf16.gmra.mrb[0].mxu0 %v116
  %v152 = vpop.f32.mrb[0].mxu0
  %v153 = vadd.f32 %v96, %v152
  %v154 = vpop.f32.mrb[0].mxu0
  %v155 = vadd.f32 %v98, %v154
  %v156 = vpop.f32.mrb[0].mxu0
  %v157 = vadd.f32 %v100, %v156
  %v158 = vpop.f32.mrb[0].mxu0
  %v159 = vadd.f32 %v102, %v158
  %160 = vdwg.mxu0
  %v161 = vld [vmem:[%s5] sm:$0x3]
  %v163 = vlaneseq
  %v164 = vshrl.u32 %v163, 7
  %v165 = vsub.s32 0, %v164
  %v166 = vrot.slane %v161, %v165
  %v167 = vlaneseq
  %v168 = vshrl.u32 %v167, 7
  %v169 = vsub.s32 1, %v168
  %v170 = vrot.slane %v161, %v169
  %v173 = vadd.f32 %v153, %v166
  %v174 = vadd.f32 %v155, %v170
  %v175 = vadd.f32 %v157, %v166
  %v176 = vadd.f32 %v159, %v170
  %v177 = vmax.f32 %v173, 0.0
  %v178 = vmax.f32 %v174, 0.0
  %v179 = vmax.f32 %v175, 0.0
  %v180 = vmax.f32 %v176, 0.0
  %v181 = vpack.c.bf16 %v179, %v177
  %v182 = vpack.c.bf16 %v180, %v178
  %v183 = vld [vmem:[%s6] sm:$0xff]
  %v184 = vld [vmem:[%s6 + $0x8] sm:$0xff]
  %v185 = vld [vmem:[%s6 + $0x10] sm:$0xff]
  %v186 = vld [vmem:[%s6 + $0x18] sm:$0xff]
  %v187 = vld [vmem:[%s6 + $0x20] sm:$0xff]
  %v188 = vld [vmem:[%s6 + $0x28] sm:$0xff]
  %v189 = vld [vmem:[%s6 + $0x30] sm:$0xff]
  %v190 = vld [vmem:[%s6 + $0x38] sm:$0xff]
  %v191 = vld [vmem:[%s6 + $0x40] sm:$0xff]
  %v192 = vld [vmem:[%s6 + $0x48] sm:$0xff]
  %v193 = vld [vmem:[%s6 + $0x50] sm:$0xff]
  %v194 = vld [vmem:[%s6 + $0x58] sm:$0xff]
  %v195 = vld [vmem:[%s6 + $0x60] sm:$0xff]
  %v196 = vld [vmem:[%s6 + $0x68] sm:$0xff]
  %v197 = vld [vmem:[%s6 + $0x70] sm:$0xff]
  %v198 = vld [vmem:[%s6 + $0x78] sm:$0xff]
  %v199 = vld [vmem:[%s6 + $0x80] sm:$0xff]
  %v200 = vld [vmem:[%s6 + $0x88] sm:$0xff]
  %v201 = vld [vmem:[%s6 + $0x90] sm:$0xff]
  %v202 = vld [vmem:[%s6 + $0x98] sm:$0xff]
  %v203 = vld [vmem:[%s6 + $0xa0] sm:$0xff]
  %v204 = vld [vmem:[%s6 + $0xa8] sm:$0xff]
  %v205 = vld [vmem:[%s6 + $0xb0] sm:$0xff]
  %v206 = vld [vmem:[%s6 + $0xb8] sm:$0xff]
  %v207 = vld [vmem:[%s6 + $0xc0] sm:$0xff]
  %v208 = vld [vmem:[%s6 + $0xc8] sm:$0xff]
  %v209 = vld [vmem:[%s6 + $0xd0] sm:$0xff]
  %v210 = vld [vmem:[%s6 + $0xd8] sm:$0xff]
  %v211 = vld [vmem:[%s6 + $0xe0] sm:$0xff]
  %v212 = vld [vmem:[%s6 + $0xe8] sm:$0xff]
  %v213 = vld [vmem:[%s6 + $0xf0] sm:$0xff]
  %v214 = vld [vmem:[%s6 + $0xf8] sm:$0xff]
  %v215 = vld [vmem:[%s7] sm:$0x3]
  %v217 = vlaneseq
  %v218 = vshrl.u32 %v217, 7
  %v219 = vsub.s32 0, %v218
  %v220 = vrot.slane %v215, %v219
  %v221 = vlaneseq
  %v222 = vshrl.u32 %v221, 7
  %v223 = vsub.s32 1, %v222
  %v224 = vrot.slane %v215, %v223
  %v259 = vunpack.c.l.b16 %v183
  %v260 = vunpack.c.h.b16 %v183
  %v261 = vunpack.c.l.b16 %v184
  %v262 = vunpack.c.h.b16 %v184
  %v263 = vunpack.c.l.b16 %v185
  %v264 = vunpack.c.h.b16 %v185
  %v265 = vunpack.c.l.b16 %v186
  %v266 = vunpack.c.h.b16 %v186
  %v267 = vunpack.c.l.b16 %v187
  %v268 = vunpack.c.h.b16 %v187
  %v269 = vunpack.c.l.b16 %v188
  %v270 = vunpack.c.h.b16 %v188
  %v271 = vunpack.c.l.b16 %v189
  %v272 = vunpack.c.h.b16 %v189
  %v273 = vunpack.c.l.b16 %v190
  %v274 = vunpack.c.h.b16 %v190
  %v275 = vunpack.c.l.b16 %v191
  %v276 = vunpack.c.h.b16 %v191
  %v277 = vunpack.c.l.b16 %v192
  %v278 = vunpack.c.h.b16 %v192
  %v279 = vunpack.c.l.b16 %v193
  %v280 = vunpack.c.h.b16 %v193
  %v281 = vunpack.c.l.b16 %v194
  %v282 = vunpack.c.h.b16 %v194
  %v283 = vunpack.c.l.b16 %v195
  %v284 = vunpack.c.h.b16 %v195
  %v285 = vunpack.c.l.b16 %v196
  %v286 = vunpack.c.h.b16 %v196
  %v287 = vunpack.c.l.b16 %v197
  %v288 = vunpack.c.h.b16 %v197
  %v289 = vunpack.c.l.b16 %v198
  %v290 = vunpack.c.h.b16 %v198
  %v291 = vunpack.c.l.b16 %v199
  %v292 = vunpack.c.h.b16 %v199
  %v293 = vunpack.c.l.b16 %v200
  %v294 = vunpack.c.h.b16 %v200
  %v295 = vunpack.c.l.b16 %v201
  %v296 = vunpack.c.h.b16 %v201
  %v297 = vunpack.c.l.b16 %v202
  %v298 = vunpack.c.h.b16 %v202
  %v299 = vunpack.c.l.b16 %v203
  %v300 = vunpack.c.h.b16 %v203
  %v301 = vunpack.c.l.b16 %v204
  %v302 = vunpack.c.h.b16 %v204
  %v303 = vunpack.c.l.b16 %v205
  %v304 = vunpack.c.h.b16 %v205
  %v305 = vunpack.c.l.b16 %v206
  %v306 = vunpack.c.h.b16 %v206
  %v307 = vunpack.c.l.b16 %v207
  %v308 = vunpack.c.h.b16 %v207
  %v309 = vunpack.c.l.b16 %v208
  %v310 = vunpack.c.h.b16 %v208
  %v311 = vunpack.c.l.b16 %v209
  %v312 = vunpack.c.h.b16 %v209
  %v313 = vunpack.c.l.b16 %v210
  %v314 = vunpack.c.h.b16 %v210
  %v315 = vunpack.c.l.b16 %v211
  %v316 = vunpack.c.h.b16 %v211
  %v317 = vunpack.c.l.b16 %v212
  %v318 = vunpack.c.h.b16 %v212
  %v319 = vunpack.c.l.b16 %v213
  %v320 = vunpack.c.h.b16 %v213
  %v321 = vunpack.c.l.b16 %v214
  %v322 = vunpack.c.h.b16 %v214
  %v323 = vpack.c.b16 %v261, %v259
  %v324 = vpack.c.b16 %v262, %v260
  %v325 = vpack.c.b16 %v265, %v263
  %v326 = vpack.c.b16 %v266, %v264
  %v327 = vpack.c.b16 %v269, %v267
  %v328 = vpack.c.b16 %v270, %v268
  %v329 = vpack.c.b16 %v273, %v271
  %v330 = vpack.c.b16 %v274, %v272
  %v331 = vpack.c.b16 %v277, %v275
  %v332 = vpack.c.b16 %v278, %v276
  %v333 = vpack.c.b16 %v281, %v279
  %v334 = vpack.c.b16 %v282, %v280
  %v335 = vpack.c.b16 %v285, %v283
  %v336 = vpack.c.b16 %v286, %v284
  %v337 = vpack.c.b16 %v289, %v287
  %v338 = vpack.c.b16 %v290, %v288
  %v339 = vpack.c.b16 %v293, %v291
  %v340 = vpack.c.b16 %v294, %v292
  %v341 = vpack.c.b16 %v297, %v295
  %v342 = vpack.c.b16 %v298, %v296
  %v343 = vpack.c.b16 %v301, %v299
  %v344 = vpack.c.b16 %v302, %v300
  %v345 = vpack.c.b16 %v305, %v303
  %v346 = vpack.c.b16 %v306, %v304
  %v347 = vpack.c.b16 %v309, %v307
  %v348 = vpack.c.b16 %v310, %v308
  %v349 = vpack.c.b16 %v313, %v311
  %v350 = vpack.c.b16 %v314, %v312
  %v351 = vpack.c.b16 %v317, %v315
  %v352 = vpack.c.b16 %v318, %v316
  %v353 = vpack.c.b16 %v321, %v319
  %v354 = vpack.c.b16 %v322, %v320
  %387 = vmatprep.subr.bf16.mxu0 %v324
  %388 = vmatpush1.bf16.msra.mxu0 %v323
  %389 = vmatprep.subr.bf16.mxu0 %v326
  %390 = vmatpush1.bf16.msra.mxu0 %v325
  %391 = vmatprep.subr.bf16.mxu0 %v328
  %392 = vmatpush1.bf16.msra.mxu0 %v327
  %393 = vmatprep.subr.bf16.mxu0 %v330
  %394 = vmatpush1.bf16.msra.mxu0 %v329
  %395 = vmatprep.subr.bf16.mxu0 %v332
  %396 = vmatpush1.bf16.msra.mxu0 %v331
  %397 = vmatprep.subr.bf16.mxu0 %v334
  %398 = vmatpush1.bf16.msra.mxu0 %v333
  %399 = vmatprep.subr.bf16.mxu0 %v336
  %400 = vmatpush1.bf16.msra.mxu0 %v335
  %401 = vmatprep.subr.bf16.mxu0 %v338
  %402 = vmatpush1.bf16.msra.mxu0 %v337
  %403 = vmatprep.subr.bf16.mxu0 %v340
  %404 = vmatpush1.bf16.msra.mxu0 %v339
  %405 = vmatprep.subr.bf16.mxu0 %v342
  %406 = vmatpush1.bf16.msra.mxu0 %v341
  %407 = vmatprep.subr.bf16.mxu0 %v344
  %408 = vmatpush1.bf16.msra.mxu0 %v343
  %409 = vmatprep.subr.bf16.mxu0 %v346
  %410 = vmatpush1.bf16.msra.mxu0 %v345
  %411 = vmatprep.subr.bf16.mxu0 %v348
  %412 = vmatpush1.bf16.msra.mxu0 %v347
  %413 = vmatprep.subr.bf16.mxu0 %v350
  %414 = vmatpush1.bf16.msra.mxu0 %v349
  %415 = vmatprep.subr.bf16.mxu0 %v352
  %416 = vmatpush1.bf16.msra.mxu0 %v351
  %417 = vmatprep.subr.bf16.mxu0 %v354
  %418 = vmatpush1.bf16.msra.mxu0 %v353
  %419 = vmatprep.mubr.bf16.mxu0 %v182
  %420 = vmatmul.mubr.bf16.gmra.mrb[0].mxu0 %v181
  %v421 = vpop.f32.mrb[0].mxu0
  %v422 = vadd.f32 %v220, %v421
  %v423 = vpop.f32.mrb[0].mxu0
  %v424 = vadd.f32 %v224, %v423
  %v425 = vpop.f32.mrb[0].mxu0
  %v426 = vadd.f32 %v220, %v425
  %v427 = vpop.f32.mrb[0].mxu0
  %v428 = vadd.f32 %v224, %v427
  %429 = vdwg.mxu0
  %v430 = vmax.f32 %v422, 0.0
  %v431 = vmax.f32 %v424, 0.0
  %v432 = vmax.f32 %v426, 0.0
  %v433 = vmax.f32 %v428, 0.0
  %v434 = vpack.c.bf16 %v432, %v430
  %v435 = vpack.c.bf16 %v433, %v431
  %v436 = vld [vmem:[%s8] sm:$0xf]
  %v437 = vld [vmem:[%s8 + $0x4] sm:$0xf]
  %v438 = vld [vmem:[%s8 + $0x8] sm:$0xf]
  %v439 = vld [vmem:[%s8 + $0xc] sm:$0xf]
  %v440 = vld [vmem:[%s8 + $0x10] sm:$0xf]
  %v441 = vld [vmem:[%s8 + $0x14] sm:$0xf]
  %v442 = vld [vmem:[%s8 + $0x18] sm:$0xf]
  %v443 = vld [vmem:[%s8 + $0x1c] sm:$0xf]
  %v444 = vld [vmem:[%s8 + $0x20] sm:$0xf]
  %v445 = vld [vmem:[%s8 + $0x24] sm:$0xf]
  %v446 = vld [vmem:[%s8 + $0x28] sm:$0xf]
  %v447 = vld [vmem:[%s8 + $0x2c] sm:$0xf]
  %v448 = vld [vmem:[%s8 + $0x30] sm:$0xf]
  %v449 = vld [vmem:[%s8 + $0x34] sm:$0xf]
  %v450 = vld [vmem:[%s8 + $0x38] sm:$0xf]
  %v451 = vld [vmem:[%s8 + $0x3c] sm:$0xf]
  %v452 = vld [vmem:[%s9] sm:$0x1]
  %v453 = vlaneseq
  %v454 = vshrl.u32 %v453, 7
  %v455 = vsub.s32 0, %v454
  %v456 = vrot.slane %v452, %v455
  %v473 = vunpack.c.l.b16 %v436
  %v474 = vunpack.c.l.b16 %v437
  %v475 = vunpack.c.l.b16 %v438
  %v476 = vunpack.c.l.b16 %v439
  %v477 = vunpack.c.l.b16 %v440
  %v478 = vunpack.c.l.b16 %v441
  %v479 = vunpack.c.l.b16 %v442
  %v480 = vunpack.c.l.b16 %v443
  %v481 = vunpack.c.l.b16 %v444
  %v482 = vunpack.c.l.b16 %v445
  %v483 = vunpack.c.l.b16 %v446
  %v484 = vunpack.c.l.b16 %v447
  %v485 = vunpack.c.l.b16 %v448
  %v486 = vunpack.c.l.b16 %v449
  %v487 = vunpack.c.l.b16 %v450
  %v488 = vunpack.c.l.b16 %v451
  %v489 = vpack.c.b16 %v474, %v473
  %v490 = vpack.c.b16 %v476, %v475
  %v491 = vpack.c.b16 %v478, %v477
  %v492 = vpack.c.b16 %v480, %v479
  %v493 = vpack.c.b16 %v482, %v481
  %v494 = vpack.c.b16 %v484, %v483
  %v495 = vpack.c.b16 %v486, %v485
  %v496 = vpack.c.b16 %v488, %v487
  %505 = vmatprep.subr.bf16.mxu0 0
  %506 = vmatpush1.bf16.msra.mxu0 %v489
  %507 = vmatprep.subr.bf16.mxu0 0
  %508 = vmatpush1.bf16.msra.mxu0 %v490
  %509 = vmatprep.subr.bf16.mxu0 0
  %510 = vmatpush1.bf16.msra.mxu0 %v491
  %511 = vmatprep.subr.bf16.mxu0 0
  %512 = vmatpush1.bf16.msra.mxu0 %v492
  %513 = vmatprep.subr.bf16.mxu0 0
  %514 = vmatpush1.bf16.msra.mxu0 %v493
  %515 = vmatprep.subr.bf16.mxu0 0
  %516 = vmatpush1.bf16.msra.mxu0 %v494
  %517 = vmatprep.subr.bf16.mxu0 0
  %518 = vmatpush1.bf16.msra.mxu0 %v495
  %519 = vmatprep.subr.bf16.mxu0 0
  %520 = vmatpush1.bf16.msra.mxu0 %v496
  %521 = vmatprep.subr.bf16.mxu0 0
  %522 = vmatpush1.bf16.msra.mxu0 0
  %523 = vmatprep.subr.bf16.mxu0 0
  %524 = vmatpush1.bf16.msra.mxu0 0
  %525 = vmatprep.subr.bf16.mxu0 0
  %526 = vmatpush1.bf16.msra.mxu0 0
  %527 = vmatprep.subr.bf16.mxu0 0
  %528 = vmatpush1.bf16.msra.mxu0 0
  %529 = vmatprep.subr.bf16.mxu0 0
  %530 = vmatpush1.bf16.msra.mxu0 0
  %531 = vmatprep.subr.bf16.mxu0 0
  %532 = vmatpush1.bf16.msra.mxu0 0
  %533 = vmatprep.subr.bf16.mxu0 0
  %534 = vmatpush1.bf16.msra.mxu0 0
  %535 = vmatprep.subr.bf16.mxu0 0
  %536 = vmatpush1.bf16.msra.mxu0 0
  %537 = vmatprep.mubr.bf16.mxu0 0
  %538 = vmatmul.mubr.bf16.gmra.mrb[0].mxu0 %v434
  %v539 = vpop.f32.mrb[0].mxu0
  %v540 = vadd.f32 %v456, %v539
  %v541 = vpop.f32.mrb[0].mxu0
  %v542 = vpop.f32.mrb[0].mxu0
  %v543 = vadd.f32 %v456, %v542
  %v544 = vpop.f32.mrb[0].mxu0
  %545 = vdwg.mxu0
  %v546 = vld [vmem:[%s8 + $0x40] sm:$0xf]
  %v547 = vld [vmem:[%s8 + $0x44] sm:$0xf]
  %v548 = vld [vmem:[%s8 + $0x48] sm:$0xf]
  %v549 = vld [vmem:[%s8 + $0x4c] sm:$0xf]
  %v550 = vld [vmem:[%s8 + $0x50] sm:$0xf]
  %v551 = vld [vmem:[%s8 + $0x54] sm:$0xf]
  %v552 = vld [vmem:[%s8 + $0x58] sm:$0xf]
  %v553 = vld [vmem:[%s8 + $0x5c] sm:$0xf]
  %v554 = vld [vmem:[%s8 + $0x60] sm:$0xf]
  %v555 = vld [vmem:[%s8 + $0x64] sm:$0xf]
  %v556 = vld [vmem:[%s8 + $0x68] sm:$0xf]
  %v557 = vld [vmem:[%s8 + $0x6c] sm:$0xf]
  %v558 = vld [vmem:[%s8 + $0x70] sm:$0xf]
  %v559 = vld [vmem:[%s8 + $0x74] sm:$0xf]
  %v560 = vld [vmem:[%s8 + $0x78] sm:$0xf]
  %v561 = vld [vmem:[%s8 + $0x7c] sm:$0xf]
  %v562 = vld [vmem:[%s9 + $0x1] sm:$0x1]
  %v563 = vlaneseq
  %v564 = vshrl.u32 %v563, 7
  %v565 = vsub.s32 0, %v564
  %v566 = vrot.slane %v562, %v565
  %v583 = vunpack.c.l.b16 %v546
  %v584 = vunpack.c.l.b16 %v547
  %v585 = vunpack.c.l.b16 %v548
  %v586 = vunpack.c.l.b16 %v549
  %v587 = vunpack.c.l.b16 %v550
  %v588 = vunpack.c.l.b16 %v551
  %v589 = vunpack.c.l.b16 %v552
  %v590 = vunpack.c.l.b16 %v553
  %v591 = vunpack.c.l.b16 %v554
  %v592 = vunpack.c.l.b16 %v555
  %v593 = vunpack.c.l.b16 %v556
  %v594 = vunpack.c.l.b16 %v557
  %v595 = vunpack.c.l.b16 %v558
  %v596 = vunpack.c.l.b16 %v559
  %v597 = vunpack.c.l.b16 %v560
  %v598 = vunpack.c.l.b16 %v561
  %v599 = vpack.c.b16 %v584, %v583
  %v600 = vpack.c.b16 %v586, %v585
  %v601 = vpack.c.b16 %v588, %v587
  %v602 = vpack.c.b16 %v590, %v589
  %v603 = vpack.c.b16 %v592, %v591
  %v604 = vpack.c.b16 %v594, %v593
  %v605 = vpack.c.b16 %v596, %v595
  %v606 = vpack.c.b16 %v598, %v597
  %615 = vmatprep.subr.bf16.mxu0 0
  %616 = vmatpush1.bf16.msra.mxu0 %v599
  %617 = vmatprep.subr.bf16.mxu0 0
  %618 = vmatpush1.bf16.msra.mxu0 %v600
  %619 = vmatprep.subr.bf16.mxu0 0
  %620 = vmatpush1.bf16.msra.mxu0 %v601
  %621 = vmatprep.subr.bf16.mxu0 0
  %622 = vmatpush1.bf16.msra.mxu0 %v602
  %623 = vmatprep.subr.bf16.mxu0 0
  %624 = vmatpush1.bf16.msra.mxu0 %v603
  %625 = vmatprep.subr.bf16.mxu0 0
  %626 = vmatpush1.bf16.msra.mxu0 %v604
  %627 = vmatprep.subr.bf16.mxu0 0
  %628 = vmatpush1.bf16.msra.mxu0 %v605
  %629 = vmatprep.subr.bf16.mxu0 0
  %630 = vmatpush1.bf16.msra.mxu0 %v606
  %631 = vmatprep.subr.bf16.mxu0 0
  %632 = vmatpush1.bf16.msra.mxu0 0
  %633 = vmatprep.subr.bf16.mxu0 0
  %634 = vmatpush1.bf16.msra.mxu0 0
  %635 = vmatprep.subr.bf16.mxu0 0
  %636 = vmatpush1.bf16.msra.mxu0 0
  %637 = vmatprep.subr.bf16.mxu0 0
  %638 = vmatpush1.bf16.msra.mxu0 0
  %639 = vmatprep.subr.bf16.mxu0 0
  %640 = vmatpush1.bf16.msra.mxu0 0
  %641 = vmatprep.subr.bf16.mxu0 0
  %642 = vmatpush1.bf16.msra.mxu0 0
  %643 = vmatprep.subr.bf16.mxu0 0
  %644 = vmatpush1.bf16.msra.mxu0 0
  %645 = vmatprep.subr.bf16.mxu0 0
  %646 = vmatpush1.bf16.msra.mxu0 0
  %647 = vmatprep.mubr.bf16.mxu0 0
  %648 = vmatmul.mubr.bf16.gmra.mrb[0].mxu0 %v435
  %v649 = vpop.f32.mrb[0].mxu0
  %v650 = vadd.f32 %v566, %v649
  %v651 = vpop.f32.mrb[0].mxu0
  %v652 = vpop.f32.mrb[0].mxu0
  %v653 = vadd.f32 %v566, %v652
  %v654 = vpop.f32.mrb[0].mxu0
  %655 = vdwg.mxu0
  %v656 = vld [vmem:[%s2] sm:$0xff]
  %v657 = vld [vmem:[%s2 + $0x8] sm:$0xff]
  %vm658 = vcmp.eq.s32.totalorder %v656, 1
  %vm659 = vcmp.eq.s32.totalorder %v657, 1
  %v660 = vsel %vm658, 1, 0
  %v661 = vsel %vm659, 1, 0
  %662 = vset.pattern.permute.xlu0 0
  %663 = vperm.xlu0 %662, %v660
  %v664 = vpop.permute.xlu0 %663
  %665 = vset.pattern.permute.xlu0 0
  %666 = vperm.xlu0 %665, %v661
  %v667 = vpop.permute.xlu0 %666
  %vm668 = vcmp.eq.s32.totalorder %v664, 1
  %vm669 = vcmp.eq.s32.totalorder %v667, 1
  %v670 = vsel %vm668, %v650, %v540
  %v671 = vsel %vm669, %v653, %v543
  %vm672 = vcmask 31744
  %673 = vst.msk [vmem:[%s10] sm:$0xff] %vm672, %v670
  %674 = vst.msk [vmem:[%s10 + $0x8] sm:$0xff] %vm672, %v671
  // Predicated region
  $region42: #{decoder_y_forward.1} parent=0 // pred_check
    _
  $region43: #{decoder_y_forward.1} parent=0 // pred_check_branch
    %676 = sbr.rel (0) target = $region45
  $region44: #{decoder_y_forward.1} parent=0 // pred_region
    _
  $region45: #{decoder_y_forward.1} parent=0 // pred_fallthru
    _
  // Predicated region
  $region46: #{decoder_y_forward.1} parent=0 // pred_check
    _
  $region47: #{decoder_y_forward.1} parent=0 // pred_check_branch
    %678 = sbr.rel (0) target = $region49
  $region48: #{decoder_y_forward.1} parent=0 // pred_region
    _
  $region49: #{decoder_y_forward.1} parent=0 // pred_fallthru
    _

</llo_original>
